<compile_context>
chip_gen: v7x
topology: tpu7x:2x2x1
jax: 0.10.0
libtpu: 0.0.40
codegen_flags: <defaults>
</compile_context>

<pallas_src>
import math

import jax
import jax.numpy as jnp
from jax.experimental import pallas as pl
from jax.experimental.pallas import tpu as pltpu

_SUB = 16  # sublane rounding that is safe for bf16 (16,128) tiling


def _round_up(x, n):
    return ((x + n - 1) // n) * n


def _vae_kernel(h_ref, eps_ref,
                w_enc_ref, b_enc_ref,
                wd1h_ref, wd1z_ref, bd1_ref,
                wd2_ref, bd2_ref,
                out_ref):
    h = h_ref[...]                      # (tm, H) bf16
    E = eps_ref.shape[-1]

    # Wide encoder: one (H, P) matmul -> f32 acc with [z_mu | z_lsgms] in
    # lanes [0, 2E) and zeros elsewhere (weights are zero-padded offline).
    zm_zl_wide = (jnp.dot(h, w_enc_ref[...], preferred_element_type=jnp.float32)
                  + b_enc_ref[...])                       # (tm, P) f32

    z_mu = zm_zl_wide[:, :E]                              # (tm, E) f32
    z_lsgms = zm_zl_wide[:, E:2 * E]                      # (tm, E) f32

    # Reparameterization in f32 (EUP exp, VPU mul/add).
    z = eps_ref[...].astype(jnp.float32) * jnp.exp(z_lsgms * 0.5) + z_mu

    # decode_1 without cat((h, z)): two small matmuls into one f32 acc.
    y1 = (jnp.dot(h, wd1h_ref[...], preferred_element_type=jnp.float32)
          + jnp.dot(z.astype(wd1z_ref.dtype), wd1z_ref[...],
                    preferred_element_type=jnp.float32)
          + bd1_ref[...])
    y1 = jnp.maximum(y1, 0.0)                             # ReLU, (tm, E) f32

    # decode_2 in wide form: weight columns live at lane offset 2E, so the
    # result lands directly in the packed output lanes [2E, 2E+Y).
    y_wide = (jnp.dot(y1.astype(wd2_ref.dtype), wd2_ref[...],
                      preferred_element_type=jnp.float32)
              + bd2_ref[...])                             # (tm, P) f32

    # Lane-dense packed store: single full-width add, single unmasked vst.
    out_ref[...] = (zm_zl_wide + y_wide).astype(out_ref.dtype)


def mlp_vae_conditional_forward(h, eps, params, *, tm=4096):
    """h: (B, S, H) f32, eps: (B, S, E) f32 noise. Returns (y, z_mu, z_lsgms) f32."""
    B, S, H = h.shape
    E = eps.shape[-1]
    P = params["w_enc"].shape[1]          # packed output width (multiple of 128)
    Y = int(params["y_size"])
    M = B * S

    # Row tile: big, multiple of 16 sublanes, clamped to the padded row count.
    M_r = _round_up(M, _SUB)
    tm = max(_SUB, min(_round_up(tm, _SUB), M_r))
    # v7x megacore: keep >=2 row blocks when there is enough work so the
    # "parallel" grid axis can shard across both TensorCores.
    if M_r >= 2048 and pl.cdiv(M_r, tm) < 2:
        tm = _round_up(pl.cdiv(M_r, 2), _SUB)
    grid_m = pl.cdiv(M, tm)
    M_pad = grid_m * tm

    bf16 = jnp.bfloat16
    h2 = h.reshape(M, H)
    eps2 = eps.reshape(M, E)
    if M_pad != M:
        h2 = jnp.pad(h2, ((0, M_pad - M), (0, 0)))
        eps2 = jnp.pad(eps2, ((0, M_pad - M), (0, 0)))

    # bf16 at the kernel boundary: halves the dominant HBM streams and hits
    # the fast bf16 MXU path.  Biases stay f32 (negligible bytes, exact add).
    h2 = h2.astype(bf16)
    eps2 = eps2.astype(bf16)
    w_enc = params["w_enc"].astype(bf16)
    wd1_h = params["wd1_h"].astype(bf16)
    wd1_z = params["wd1_z"].astype(bf16)
    wd2 = params["wd2"].astype(bf16)
    b_enc = params["b_enc"].astype(jnp.float32)
    bd1 = params["bd1"].astype(jnp.float32)
    bd2 = params["bd2"].astype(jnp.float32)

    rows = lambda i: (i, 0)   # row-tiled operands
    full = lambda i: (0, 0)   # grid-invariant weights / biases

    flops = 2 * M_pad * (H * P + H * E + E * E + E * P)
    bytes_accessed = (2 * (M_pad * (H + E + P)
                           + H * P + H * E + E * E + E * P)
                      + 4 * (P + E + P))
    cost = pl.CostEstimate(flops=flops,
                           transcendentals=M_pad * E,
                           bytes_accessed=bytes_accessed)

    packed = pl.pallas_call(
        _vae_kernel,
        out_shape=jax.ShapeDtypeStruct((M_pad, P), bf16),
        grid_spec=pltpu.PrefetchScalarGridSpec(
            num_scalar_prefetch=0,
            grid=(grid_m,),
            in_specs=[
                pl.BlockSpec((tm, H), rows),      # h
                pl.BlockSpec((tm, E), rows),      # eps
                pl.BlockSpec((H, P), full),       # encoder weight (padded to P)
                pl.BlockSpec((1, P), full),       # encoder bias   (padded to P)
                pl.BlockSpec((H, E), full),       # decode_1 weight (h part)
                pl.BlockSpec((E, E), full),       # decode_1 weight (z part)
                pl.BlockSpec((1, E), full),       # decode_1 bias
                pl.BlockSpec((E, P), full),       # decode_2 weight (cols at 2E)
                pl.BlockSpec((1, P), full),       # decode_2 bias   (cols at 2E)
            ],
            out_specs=pl.BlockSpec((tm, P), rows),
        ),
        compiler_params=pltpu.CompilerParams(
            dimension_semantics=("parallel",),
            vmem_limit_bytes=32 * 1024 * 1024),
        cost_estimate=cost,
    )(h2, eps2, w_enc, b_enc, wd1_h, wd1_z, bd1, wd2, bd2)

    packedf = packed[:M].astype(jnp.float32)
    z_mu = packedf[:, :E].reshape(B, S, E)
    z_lsgms = packedf[:, E:2 * E].reshape(B, S, E)
    y = packedf[:, 2 * E:2 * E + Y].reshape(B, S, Y)
    return y, z_mu, z_lsgms


def _xavier_uniform(key, shape, gain):
    # shape = (fan_out, fan_in), like a torch Linear weight.
    fan_out, fan_in = shape
    bound = gain * math.sqrt(6.0 / (fan_in + fan_out))
    return jax.random.uniform(key, shape, jnp.float32, -bound, bound)


def init_params(key, h_size, embedding_size, y_size):
    """Torch-like init, then pre-pack/zero-pad weights for the fused kernel."""
    gain = math.sqrt(2.0)  # nn.init.calculate_gain('relu')
    H, E, Y = h_size, embedding_size, y_size
    P = _round_up(2 * E + Y, 128)
    ks = jax.random.split(key, 8)

    # torch Linear weights are (out, in); store transposed (in, out).
    w11 = _xavier_uniform(ks[0], (E, H), gain).T            # (H, E)
    w12 = _xavier_uniform(ks[1], (E, H), gain).T            # (H, E)
    wd1 = _xavier_uniform(ks[2], (E, E + H), gain).T        # (H+E, E), rows [0:H]->h, [H:]->z
    wd2 = _xavier_uniform(ks[3], (Y, E), gain).T             # (E, Y)

    def bias(k, fan_in, n):
        b = 1.0 / math.sqrt(fan_in)
        return jax.random.uniform(k, (1, n), jnp.float32, -b, b)

    b11 = bias(ks[4], H, E)
    b12 = bias(ks[5], H, E)
    bd1 = bias(ks[6], H + E, E)
    bd2 = bias(ks[7], E, Y)

    # Fused encoder weight/bias, zero-padded to the packed output width P:
    # columns [0:E) -> z_mu, [E:2E) -> z_lsgms, [2E:P) -> zeros.
    w_enc = jnp.pad(jnp.concatenate([w11, w12], axis=1), ((0, 0), (0, P - 2 * E)))
    b_enc = jnp.pad(jnp.concatenate([b11, b12], axis=1), ((0, 0), (0, P - 2 * E)))

    # decode_2 weight/bias zero-padded with the Y columns at lane offset 2E.
    wd2_wide = jnp.pad(wd2, ((0, 0), (2 * E, P - 2 * E - Y)))
    bd2_wide = jnp.pad(bd2, ((0, 0), (2 * E, P - 2 * E - Y)))

    return {
        "w_enc": w_enc, "b_enc": b_enc,
        "wd1_h": wd1[:H], "wd1_z": wd1[H:], "bd1": bd1,
        "wd2": wd2_wide, "bd2": bd2_wide,
        "y_size": Y,
    }


if __name__ == "__main__":
    B, S = 2, 8
    h_size, embedding_size, y_size = 32, 32, 16

    key = jax.random.PRNGKey(0)
    k_param, k_h, k_eps = jax.random.split(key, 3)

    params = init_params(k_param, h_size, embedding_size, y_size)
    h = jax.random.normal(k_h, (B, S, h_size), jnp.float32)
    # eps is the randn reparameterization noise, passed in deterministically.
    eps = jax.random.normal(k_eps, (B, S, embedding_size), jnp.float32)

    y, z_mu, z_lsgms = mlp_vae_conditional_forward(h, eps, params)
    jax.block_until_ready((y, z_mu, z_lsgms))

    # bf16-faithful pure-JAX reference (inputs/weights rounded to bf16, f32 math).
    E, Y = embedding_size, y_size

    def rt(x):
        return x.astype(jnp.bfloat16).astype(jnp.float32)

    w_enc = rt(params["w_enc"])[:, :2 * E]
    b_enc = params["b_enc"][:, :2 * E]
    wd1_h, wd1_z = rt(params["wd1_h"]), rt(params["wd1_z"])
    bd1 = params["bd1"]
    wd2 = rt(params["wd2"])[:, 2 * E:2 * E + Y]
    bd2 = params["bd2"][:, 2 * E:2 * E + Y]

    hb, epsb = rt(h), rt(eps)
    zm_zl = hb @ w_enc + b_enc[0]
    zm_r, zl_r = zm_zl[..., :E], zm_zl[..., E:]
    z_r = epsb * jnp.exp(0.5 * zl_r) + zm_r
    y1_r = jnp.maximum(hb @ wd1_h + z_r @ wd1_z + bd1[0], 0.0)
    y_r = y1_r @ wd2 + bd2[0]

    assert jnp.allclose(z_mu, zm_r, rtol=5e-2, atol=5e-2), "z_mu mismatch"
    assert jnp.allclose(z_lsgms, zl_r, rtol=5e-2, atol=5e-2), "z_lsgms mismatch"
    assert jnp.allclose(y, y_r, rtol=5e-2, atol=5e-2), "y mismatch"

    print("KERNEL_OK")
</pallas_src>

<mosaic_0001>
module attributes {stable_mosaic.version = 11 : i64} {
  func.func @_vae_kernel(%arg0: i32, %arg1: memref<16x32xbf16, #tpu.memory_space<vmem>>, %arg2: memref<16x32xbf16, #tpu.memory_space<vmem>>, %arg3: memref<32x128xbf16, #tpu.memory_space<vmem>>, %arg4: memref<1x128xf32, #tpu.memory_space<vmem>>, %arg5: memref<32x32xbf16, #tpu.memory_space<vmem>>, %arg6: memref<32x32xbf16, #tpu.memory_space<vmem>>, %arg7: memref<1x32xf32, #tpu.memory_space<vmem>>, %arg8: memref<32x128xbf16, #tpu.memory_space<vmem>>, %arg9: memref<1x128xf32, #tpu.memory_space<vmem>>, %arg10: memref<16x128xbf16, #tpu.memory_space<vmem>>) attributes {dimension_semantics = [#tpu.dimension_semantics<parallel>], iteration_bounds = array<i64: 1>, scalar_prefetch = 0 : i64, scratch_operands = 0 : i64, tpu.core_type = #tpu.core_type<tc>, window_params = [{transform_indices = @transform_0, window_bounds = array<i64: 16, 32>}, {transform_indices = @transform_1, window_bounds = array<i64: 16, 32>}, {pipeline_mode = #tpu.pipeline_mode<synchronous>, transform_indices = @transform_2, window_bounds = array<i64: 32, 128>}, {pipeline_mode = #tpu.pipeline_mode<synchronous>, transform_indices = @transform_3, window_bounds = array<i64: 1, 128>}, {pipeline_mode = #tpu.pipeline_mode<synchronous>, transform_indices = @transform_4, window_bounds = array<i64: 32, 32>}, {pipeline_mode = #tpu.pipeline_mode<synchronous>, transform_indices = @transform_5, window_bounds = array<i64: 32, 32>}, {pipeline_mode = #tpu.pipeline_mode<synchronous>, transform_indices = @transform_6, window_bounds = array<i64: 1, 32>}, {pipeline_mode = #tpu.pipeline_mode<synchronous>, transform_indices = @transform_7, window_bounds = array<i64: 32, 128>}, {pipeline_mode = #tpu.pipeline_mode<synchronous>, transform_indices = @transform_8, window_bounds = array<i64: 1, 128>}, {transform_indices = @transform_9, window_bounds = array<i64: 16, 128>}]} {
    %c0 = arith.constant 0 : index
    %c0_0 = arith.constant 0 : index
    %0 = vector.load %arg1[%c0, %c0_0] : memref<16x32xbf16, #tpu.memory_space<vmem>>, vector<16x32xbf16>
    %c0_1 = arith.constant 0 : index
    %c0_2 = arith.constant 0 : index
    %1 = vector.load %arg3[%c0_1, %c0_2] : memref<32x128xbf16, #tpu.memory_space<vmem>>, vector<32x128xbf16>
    %cst = arith.constant dense<0.000000e+00> : vector<16x128xf32>
    %2 = tpu.matmul %0, %1, %cst {dimension_numbers = #tpu.dot_dimension_numbers<[1], [0], [0], [1], [0, 0, 1, 1], [], []>} : vector<16x32xbf16>, vector<32x128xbf16>, vector<16x128xf32> -> vector<16x128xf32>
    %c0_3 = arith.constant 0 : index
    %c0_4 = arith.constant 0 : index
    %3 = vector.load %arg4[%c0_3, %c0_4] : memref<1x128xf32, #tpu.memory_space<vmem>>, vector<1x128xf32>
    %4 = vector.broadcast %3 : vector<1x128xf32> to vector<16x128xf32>
    %5 = arith.addf %2, %4 : vector<16x128xf32>
    %6 = vector.extract_strided_slice %5 {offsets = [0, 0], sizes = [16, 32], strides = [1, 1]} : vector<16x128xf32> to vector<16x32xf32>
    %7 = vector.extract_strided_slice %5 {offsets = [0, 32], sizes = [16, 32], strides = [1, 1]} : vector<16x128xf32> to vector<16x32xf32>
    %c0_5 = arith.constant 0 : index
    %c0_6 = arith.constant 0 : index
    %8 = vector.load %arg2[%c0_5, %c0_6] : memref<16x32xbf16, #tpu.memory_space<vmem>>, vector<16x32xbf16>
    %9 = arith.extf %8 : vector<16x32xbf16> to vector<16x32xf32>
    %cst_7 = arith.constant 5.000000e-01 : f32
    %10 = vector.broadcast %cst_7 : f32 to vector<16x32xf32>
    %11 = arith.mulf %7, %10 : vector<16x32xf32>
    %12 = math.exp %11 : vector<16x32xf32>
    %13 = arith.mulf %9, %12 : vector<16x32xf32>
    %14 = arith.addf %13, %6 : vector<16x32xf32>
    %c0_8 = arith.constant 0 : index
    %c0_9 = arith.constant 0 : index
    %15 = vector.load %arg5[%c0_8, %c0_9] : memref<32x32xbf16, #tpu.memory_space<vmem>>, vector<32x32xbf16>
    %cst_10 = arith.constant dense<0.000000e+00> : vector<16x32xf32>
    %16 = tpu.matmul %0, %15, %cst_10 {dimension_numbers = #tpu.dot_dimension_numbers<[1], [0], [0], [1], [0, 0, 1, 1], [], []>} : vector<16x32xbf16>, vector<32x32xbf16>, vector<16x32xf32> -> vector<16x32xf32>
    %17 = arith.truncf %14 : vector<16x32xf32> to vector<16x32xbf16>
    %c0_11 = arith.constant 0 : index
    %c0_12 = arith.constant 0 : index
    %18 = vector.load %arg6[%c0_11, %c0_12] : memref<32x32xbf16, #tpu.memory_space<vmem>>, vector<32x32xbf16>
    %cst_13 = arith.constant dense<0.000000e+00> : vector<16x32xf32>
    %19 = tpu.matmul %17, %18, %cst_13 {dimension_numbers = #tpu.dot_dimension_numbers<[1], [0], [0], [1], [0, 0, 1, 1], [], []>} : vector<16x32xbf16>, vector<32x32xbf16>, vector<16x32xf32> -> vector<16x32xf32>
    %20 = arith.addf %16, %19 : vector<16x32xf32>
    %c0_14 = arith.constant 0 : index
    %c0_15 = arith.constant 0 : index
    %21 = vector.load %arg7[%c0_14, %c0_15] : memref<1x32xf32, #tpu.memory_space<vmem>>, vector<1x32xf32>
    %22 = vector.broadcast %21 : vector<1x32xf32> to vector<16x32xf32>
    %23 = arith.addf %20, %22 : vector<16x32xf32>
    %cst_16 = arith.constant 0.000000e+00 : f32
    %24 = vector.broadcast %cst_16 : f32 to vector<16x32xf32>
    %25 = arith.maximumf %23, %24 : vector<16x32xf32>
    %26 = arith.truncf %25 : vector<16x32xf32> to vector<16x32xbf16>
    %c0_17 = arith.constant 0 : index
    %c0_18 = arith.constant 0 : index
    %27 = vector.load %arg8[%c0_17, %c0_18] : memref<32x128xbf16, #tpu.memory_space<vmem>>, vector<32x128xbf16>
    %cst_19 = arith.constant dense<0.000000e+00> : vector<16x128xf32>
    %28 = tpu.matmul %26, %27, %cst_19 {dimension_numbers = #tpu.dot_dimension_numbers<[1], [0], [0], [1], [0, 0, 1, 1], [], []>} : vector<16x32xbf16>, vector<32x128xbf16>, vector<16x128xf32> -> vector<16x128xf32>
    %c0_20 = arith.constant 0 : index
    %c0_21 = arith.constant 0 : index
    %29 = vector.load %arg9[%c0_20, %c0_21] : memref<1x128xf32, #tpu.memory_space<vmem>>, vector<1x128xf32>
    %30 = vector.broadcast %29 : vector<1x128xf32> to vector<16x128xf32>
    %31 = arith.addf %28, %30 : vector<16x128xf32>
    %32 = arith.addf %5, %31 : vector<16x128xf32>
    %33 = arith.truncf %32 : vector<16x128xf32> to vector<16x128xbf16>
    %c0_22 = arith.constant 0 : index
    %c0_23 = arith.constant 0 : index
    %34 = vector.load %arg10[%c0_22, %c0_23] : memref<16x128xbf16, #tpu.memory_space<vmem>>, vector<16x128xbf16>
    tpu.vector_store %arg10[%c0_22, %c0_23], %33 {strides = array<i32>} : memref<16x128xbf16, #tpu.memory_space<vmem>>, vector<16x128xbf16>,
    return
  }
  func.func @transform_0(%arg0: i32) -> (i32, i32) {
    %c0_i32 = arith.constant 0 : i32
    %c0_i32_0 = arith.constant 0 : i32
    return %arg0, %c0_i32 : i32, i32
  }
  func.func @transform_1(%arg0: i32) -> (i32, i32) {
    %c0_i32 = arith.constant 0 : i32
    %c0_i32_0 = arith.constant 0 : i32
    return %arg0, %c0_i32 : i32, i32
  }
  func.func @transform_2(%arg0: i32) -> (i32, i32) {
    %c0_i32 = arith.constant 0 : i32
    %c0_i32_0 = arith.constant 0 : i32
    %c0_i32_1 = arith.constant 0 : i32
    return %c0_i32, %c0_i32_0 : i32, i32
  }
  func.func @transform_3(%arg0: i32) -> (i32, i32) {
    %c0_i32 = arith.constant 0 : i32
    %c0_i32_0 = arith.constant 0 : i32
    %c0_i32_1 = arith.constant 0 : i32
    return %c0_i32, %c0_i32_0 : i32, i32
  }
  func.func @transform_4(%arg0: i32) -> (i32, i32) {
    %c0_i32 = arith.constant 0 : i32
    %c0_i32_0 = arith.constant 0 : i32
    %c0_i32_1 = arith.constant 0 : i32
    return %c0_i32, %c0_i32_0 : i32, i32
  }
  func.func @transform_5(%arg0: i32) -> (i32, i32) {
    %c0_i32 = arith.constant 0 : i32
    %c0_i32_0 = arith.constant 0 : i32
    %c0_i32_1 = arith.constant 0 : i32
    return %c0_i32, %c0_i32_0 : i32, i32
  }
  func.func @transform_6(%arg0: i32) -> (i32, i32) {
    %c0_i32 = arith.constant 0 : i32
    %c0_i32_0 = arith.constant 0 : i32
    %c0_i32_1 = arith.constant 0 : i32
    return %c0_i32, %c0_i32_0 : i32, i32
  }
  func.func @transform_7(%arg0: i32) -> (i32, i32) {
    %c0_i32 = arith.constant 0 : i32
    %c0_i32_0 = arith.constant 0 : i32
    %c0_i32_1 = arith.constant 0 : i32
    return %c0_i32, %c0_i32_0 : i32, i32
  }
  func.func @transform_8(%arg0: i32) -> (i32, i32) {
    %c0_i32 = arith.constant 0 : i32
    %c0_i32_0 = arith.constant 0 : i32
    %c0_i32_1 = arith.constant 0 : i32
    return %c0_i32, %c0_i32_0 : i32, i32
  }
  func.func @transform_9(%arg0: i32) -> (i32, i32) {
    %c0_i32 = arith.constant 0 : i32
    %c0_i32_0 = arith.constant 0 : i32
    return %arg0, %c0_i32 : i32, i32
  }
}

</mosaic_0001>

<llo_original>
// kernel: tpu_custom_call.1
$region0: #{tpu_custom_call.1}
  #allocation0 [shape = 'u32[]', space=smem, size = 0x4, offset = 0x4, fixed_abs, tag = 'smem constant byte address 0x4 - core index']
  #allocation1 [shape = 'u32[144,128]{1,0:T(1,128)}', space=vmem, size = 0x12000, scoped, tag = 'internal scratch']
  %s0 = inlined_call_operand.hbm [shape: bf16[16,32], index: 0, kind: input, shape index: {}]
  %s1 = inlined_call_operand.hbm [shape: bf16[16,32], index: 1, kind: input, shape index: {}]
  %s2 = inlined_call_operand.hbm [shape: bf16[32,128], index: 2, kind: input, shape index: {}]
  %s3 = inlined_call_operand.vmem [shape: f32[1,128], index: 3, kind: input, shape index: {}]
  %s4 = inlined_call_operand.hbm [shape: bf16[32,32], index: 4, kind: input, shape index: {}]
  %s5 = inlined_call_operand.vmem [shape: bf16[32,32], index: 5, kind: input, shape index: {}]
  %s6 = inlined_call_operand.vmem [shape: f32[1,32], index: 6, kind: input, shape index: {}]
  %s7 = inlined_call_operand.hbm [shape: bf16[32,128], index: 7, kind: input, shape index: {}]
  %s8 = inlined_call_operand.vmem [shape: f32[1,128], index: 8, kind: input, shape index: {}]
  %s9 = inlined_call_operand.hbm [shape: bf16[16,128], index: 9, kind: output, shape index: {}]
  %s10 = sld [smem:[#allocation0]]
  $region66: #{tpu_custom_call.1} parent=0
    _
  %s12 = ssub.s32 1, %s10
  %s13 = scalar_select 0, %s12, %s10
  $region1: #{tpu_custom_call.1} parent=0
    #allocation2 [shape = 'u8[4096]{0}', space=vmem, size = 0x1000, scoped, tag = 'input window, operand 0, single buffered']
    #allocation3 [shape = 's32[1]{0}', space=sflag, size = 0x4, scoped, tag = 'scoped memory for tpu_custom_call.1']
    #allocation4 [shape = 's32[1]{0}', space=sflag, size = 0x4, scoped, tag = 'scoped memory for tpu_custom_call.1']
    #allocation5 [shape = 'u8[4096]{0}', space=vmem, size = 0x1000, scoped, tag = 'input window, operand 1, single buffered']
    #allocation6 [shape = 's32[1]{0}', space=sflag, size = 0x4, scoped, tag = 'scoped memory for tpu_custom_call.1']
    #allocation7 [shape = 'u8[8192]{0}', space=vmem, size = 0x2000, scoped, tag = 'input window, operand 2, single buffered']
    #allocation8 [shape = 'u8[8192]{0}', space=vmem, size = 0x2000, scoped, tag = 'input window, operand 4, single buffered']
    #allocation9 [shape = 's32[1]{0}', space=sflag, size = 0x4, scoped, tag = 'scoped memory for tpu_custom_call.1']
    #allocation10 [shape = 'u8[8192]{0}', space=vmem, size = 0x2000, scoped, tag = 'input window, operand 7, single buffered']
    #allocation11 [shape = 'u8[4096]{0}', space=vmem, size = 0x1000, scoped, tag = 'output window, operand 0, single buffered']
    %14 = vsyncpa [#allocation3], 0
    %15 = vsyncpa [#allocation6], 0
    %16 = vsyncpa [#allocation9], 0
    %17 = vsyncpa [#allocation4], 0
    // Predicated region
    $region2: #{tpu_custom_call.1} parent=1 // pred_check
      _
    $region3: #{tpu_custom_call.1} parent=1 // pred_check_branch
      %19 = sbr.rel (0) target = $region5
    $region4: #{tpu_custom_call.1} parent=1 // pred_region
      %s21 = ssub.s32 128, 128
      %22 = vsyncadd [#allocation3], %s21
      %s23 = sshll.u32 [#allocation2], 4
      %s24 = int_to_ptr.vmem [resolvable:$true] %s23
      %29 = dma.hbm_to_vmem [thread:$0]  %s0, 128, %s24, [#allocation3], 64, 64, 4
    $region5: #{tpu_custom_call.1} parent=1 // pred_fallthru
      _
    // Predicated region
    $region6: #{tpu_custom_call.1} parent=1 // pred_check
      _
    $region7: #{tpu_custom_call.1} parent=1 // pred_check_branch
      %31 = sbr.rel (0) target = $region9
    $region8: #{tpu_custom_call.1} parent=1 // pred_region
      %s33 = ssub.s32 128, 128
      %34 = vsyncadd [#allocation6], %s33
      %s35 = sshll.u32 [#allocation5], 4
      %s36 = int_to_ptr.vmem [resolvable:$true] %s35
      %41 = dma.hbm_to_vmem [thread:$0]  %s1, 128, %s36, [#allocation6], 64, 64, 4
    $region9: #{tpu_custom_call.1} parent=1 // pred_fallthru
      _
    // Predicated region
    $region10: #{tpu_custom_call.1} parent=1 // pred_check
      _
    $region11: #{tpu_custom_call.1} parent=1 // pred_check_branch
      %43 = sbr.rel (0) target = $region13
    $region12: #{tpu_custom_call.1} parent=1 // pred_region
      %s45 = ssub.s32 256, 256
      %46 = vsyncadd [#allocation6], %s45
      %s47 = sshll.u32 [#allocation7], 4
      %s48 = int_to_ptr.vmem [resolvable:$true] %s47
      %53 = dma.hbm_to_vmem [thread:$0]  %s2, 256, %s48, [#allocation6], 64, 64, 4
    $region13: #{tpu_custom_call.1} parent=1 // pred_fallthru
      _
    // Predicated region
    $region14: #{tpu_custom_call.1} parent=1 // pred_check
      _
    $region15: #{tpu_custom_call.1} parent=1 // pred_check_branch
      %55 = sbr.rel (0) target = $region17
    $region16: #{tpu_custom_call.1} parent=1 // pred_region
      _
    $region17: #{tpu_custom_call.1} parent=1 // pred_fallthru
      _
    // Predicated region
    $region18: #{tpu_custom_call.1} parent=1 // pred_check
      _
    $region19: #{tpu_custom_call.1} parent=1 // pred_check_branch
      %57 = sbr.rel (0) target = $region21
    $region20: #{tpu_custom_call.1} parent=1 // pred_region
      %s59 = ssub.s32 256, 256
      %60 = vsyncadd [#allocation9], %s59
      %s61 = sshll.u32 [#allocation8], 4
      %s62 = int_to_ptr.vmem [resolvable:$true] %s61
      %67 = dma.hbm_to_vmem [thread:$0]  %s4, 256, %s62, [#allocation9], 64, 64, 4
    $region21: #{tpu_custom_call.1} parent=1 // pred_fallthru
      _
    // Predicated region
    $region22: #{tpu_custom_call.1} parent=1 // pred_check
      _
    $region23: #{tpu_custom_call.1} parent=1 // pred_check_branch
      %69 = sbr.rel (0) target = $region25
    $region24: #{tpu_custom_call.1} parent=1 // pred_region
      _
    $region25: #{tpu_custom_call.1} parent=1 // pred_fallthru
      _
    // Predicated region
    $region26: #{tpu_custom_call.1} parent=1 // pred_check
      _
    $region27: #{tpu_custom_call.1} parent=1 // pred_check_branch
      %71 = sbr.rel (0) target = $region29
    $region28: #{tpu_custom_call.1} parent=1 // pred_region
      _
    $region29: #{tpu_custom_call.1} parent=1 // pred_fallthru
      _
    // Predicated region
    $region30: #{tpu_custom_call.1} parent=1 // pred_check
      _
    $region31: #{tpu_custom_call.1} parent=1 // pred_check_branch
      %73 = sbr.rel (0) target = $region33
    $region32: #{tpu_custom_call.1} parent=1 // pred_region
      %s75 = ssub.s32 256, 256
      %76 = vsyncadd [#allocation9], %s75
      %s77 = sshll.u32 [#allocation10], 4
      %s78 = int_to_ptr.vmem [resolvable:$true] %s77
      %83 = dma.hbm_to_vmem [thread:$0]  %s7, 256, %s78, [#allocation9], 64, 64, 4
    $region33: #{tpu_custom_call.1} parent=1 // pred_fallthru
      _
    // Predicated region
    $region34: #{tpu_custom_call.1} parent=1 // pred_check
      _
    $region35: #{tpu_custom_call.1} parent=1 // pred_check_branch
      %85 = sbr.rel (0) target = $region37
    $region36: #{tpu_custom_call.1} parent=1 // pred_region
      _
    $region37: #{tpu_custom_call.1} parent=1 // pred_fallthru
      _
    // Predicated region
    $region38: #{tpu_custom_call.1} parent=1 // pred_check
      _
    $region39: #{tpu_custom_call.1} parent=1 // pred_check_branch
      %87 = sbr.rel (0) target = $region41
    $region40: #{tpu_custom_call.1} parent=1 // pred_region
      %88 = dma.done [#allocation3], 128
    $region41: #{tpu_custom_call.1} parent=1 // pred_fallthru
      _
    // Predicated region
    $region42: #{tpu_custom_call.1} parent=1 // pred_check
      _
    $region43: #{tpu_custom_call.1} parent=1 // pred_check_branch
      %90 = sbr.rel (0) target = $region45
    $region44: #{tpu_custom_call.1} parent=1 // pred_region
      %91 = dma.done [#allocation6], 128
    $region45: #{tpu_custom_call.1} parent=1 // pred_fallthru
      _
    // Predicated region
    $region46: #{tpu_custom_call.1} parent=1 // pred_check
      _
    $region47: #{tpu_custom_call.1} parent=1 // pred_check_branch
      %93 = sbr.rel (0) target = $region49
    $region48: #{tpu_custom_call.1} parent=1 // pred_region
      %94 = dma.done [#allocation6], 256
    $region49: #{tpu_custom_call.1} parent=1 // pred_fallthru
      _
    // Predicated region
    $region50: #{tpu_custom_call.1} parent=1 // pred_check
      _
    $region51: #{tpu_custom_call.1} parent=1 // pred_check_branch
      %96 = sbr.rel (0) target = $region53
    $region52: #{tpu_custom_call.1} parent=1 // pred_region
      %97 = dma.done [#allocation9], 256
    $region53: #{tpu_custom_call.1} parent=1 // pred_fallthru
      _
    // Predicated region
    $region54: #{tpu_custom_call.1} parent=1 // pred_check
      _
    $region55: #{tpu_custom_call.1} parent=1 // pred_check_branch
      %99 = sbr.rel (0) target = $region57
    $region56: #{tpu_custom_call.1} parent=1 // pred_region
      %100 = dma.done [#allocation9], 256
    $region57: #{tpu_custom_call.1} parent=1 // pred_fallthru
      _
    %v102 = vld [vmem:[#allocation2] sm:$0xf]
    %v103 = vld [vmem:[#allocation2 + $0x4] sm:$0xf]
    %v104 = vld [vmem:[#allocation7] sm:$0xf]
    %v105 = vld [vmem:[#allocation7 + $0x4] sm:$0xf]
    %v106 = vld [vmem:[#allocation7 + $0x8] sm:$0xf]
    %v107 = vld [vmem:[#allocation7 + $0xc] sm:$0xf]
    %v108 = vld [vmem:[%s3] sm:$0x1]
    %v110 = vlaneseq
    %v111 = vshrl.u32 %v110, 7
    %v112 = vsub.s32 0, %v111
    %v113 = vrot.slane %v108, %v112
    %v117 = vunpack.c.l.b16 %v102
    %v118 = vunpack.c.l.b16 %v103
    %v119 = vpack.c.b16 %v118, %v117
    %v124 = vunpack.c.l.b16 %v104
    %v125 = vunpack.c.l.b16 %v105
    %v126 = vunpack.c.l.b16 %v106
    %v127 = vunpack.c.l.b16 %v107
    %v128 = vpack.c.b16 %v125, %v124
    %v129 = vpack.c.b16 %v127, %v126
    %vm132 = vcmask 261120
    %v134 = vsel %vm132, %v119, 0
    %136 = vmatprep.subr.bf16.mxu0 0
    %137 = vmatpush1.bf16.msra.mxu0 %v128
    %138 = vmatprep.subr.bf16.mxu0 0
    %139 = vmatpush1.bf16.msra.mxu0 %v129
    %140 = vmatprep.subr.bf16.mxu0 0
    %141 = vmatpush1.bf16.msra.mxu0 0
    %142 = vmatprep.subr.bf16.mxu0 0
    %143 = vmatpush1.bf16.msra.mxu0 0
    %144 = vmatprep.subr.bf16.mxu0 0
    %145 = vmatpush1.bf16.msra.mxu0 0
    %146 = vmatprep.subr.bf16.mxu0 0
    %147 = vmatpush1.bf16.msra.mxu0 0
    %148 = vmatprep.subr.bf16.mxu0 0
    %149 = vmatpush1.bf16.msra.mxu0 0
    %150 = vmatprep.subr.bf16.mxu0 0
    %151 = vmatpush1.bf16.msra.mxu0 0
    %152 = vmatprep.subr.bf16.mxu0 0
    %153 = vmatpush1.bf16.msra.mxu0 0
    %154 = vmatprep.subr.bf16.mxu0 0
    %155 = vmatpush1.bf16.msra.mxu0 0
    %156 = vmatprep.subr.bf16.mxu0 0
    %157 = vmatpush1.bf16.msra.mxu0 0
    %158 = vmatprep.subr.bf16.mxu0 0
    %159 = vmatpush1.bf16.msra.mxu0 0
    %160 = vmatprep.subr.bf16.mxu0 0
    %161 = vmatpush1.bf16.msra.mxu0 0
    %162 = vmatprep.subr.bf16.mxu0 0
    %163 = vmatpush1.bf16.msra.mxu0 0
    %164 = vmatprep.subr.bf16.mxu0 0
    %165 = vmatpush1.bf16.msra.mxu0 0
    %166 = vmatprep.subr.bf16.mxu0 0
    %167 = vmatpush1.bf16.msra.mxu0 0
    %168 = vmatprep.mubr.bf16.mxu0 0
    %169 = vmatmul.mubr.bf16.gmra.mrb[0].mxu0 %v134
    %v170 = vpop.f32.mrb[0].mxu0
    %v171 = vadd.f32 %v113, %v170
    %v172 = vpop.f32.mrb[0].mxu0
    %v173 = vpop.f32.mrb[0].mxu0
    %v174 = vadd.f32 %v113, %v173
    %v175 = vpop.f32.mrb[0].mxu0
    %176 = vdwg.mxu0
    %v177 = vld [vmem:[#allocation5] sm:$0xf]
    %v178 = vld [vmem:[#allocation5 + $0x4] sm:$0xf]
    %v179 = vunpack.c.l.bf16 %v177
    %v180 = vunpack.c.l.bf16 %v178
    %v181 = vmul.f32 %v171, 0.5
    %v182 = vmul.f32 %v174, 0.5
    %v183 = vmul.f32 %v181, 1.442695
    %v184 = vpow.pop %v183
    %v185 = vmul.f32 %v182, 1.442695
    %v186 = vpow.pop %v185
    %189 = vrot.lane.b32.xlu0 %v184, 96
    %v190 = vpop.permute.xlu0 %189
    %191 = vrot.lane.b32.xlu0 %v186, 96
    %v192 = vpop.permute.xlu0 %191
    %v195 = vmul.f32 %v179, %v190
    %v196 = vmul.f32 %v180, %v192
    %v197 = vadd.f32 %v195, %v171
    %v198 = vadd.f32 %v196, %v174
    %v199 = vld [vmem:[#allocation8] sm:$0xf]
    %v200 = vld [vmem:[#allocation8 + $0x4] sm:$0xf]
    %v201 = vld [vmem:[#allocation8 + $0x8] sm:$0xf]
    %v202 = vld [vmem:[#allocation8 + $0xc] sm:$0xf]
    %v203 = vpack.c.bf16 %v198, %v197
    %v204 = vld [vmem:[%s5] sm:$0xf]
    %v205 = vld [vmem:[%s5 + $0x4] sm:$0xf]
    %v206 = vld [vmem:[%s5 + $0x8] sm:$0xf]
    %v207 = vld [vmem:[%s5 + $0xc] sm:$0xf]
    %v212 = vunpack.c.l.b16 %v204
    %v213 = vunpack.c.l.b16 %v205
    %v214 = vunpack.c.l.b16 %v206
    %v215 = vunpack.c.l.b16 %v207
    %v216 = vpack.c.b16 %v213, %v212
    %v217 = vpack.c.b16 %v215, %v214
    %v221 = vsel %vm132, %v203, 0
    %223 = vmatprep.subr.bf16.mxu0 0
    %224 = vmatpush1.bf16.msra.mxu0 %v216
    %225 = vmatprep.subr.bf16.mxu0 0
    %226 = vmatpush1.bf16.msra.mxu0 %v217
    %227 = vmatprep.subr.bf16.mxu0 0
    %228 = vmatpush1.bf16.msra.mxu0 0
    %229 = vmatprep.subr.bf16.mxu0 0
    %230 = vmatpush1.bf16.msra.mxu0 0
    %231 = vmatprep.subr.bf16.mxu0 0
    %232 = vmatpush1.bf16.msra.mxu0 0
    %233 = vmatprep.subr.bf16.mxu0 0
    %234 = vmatpush1.bf16.msra.mxu0 0
    %235 = vmatprep.subr.bf16.mxu0 0
    %236 = vmatpush1.bf16.msra.mxu0 0
    %237 = vmatprep.subr.bf16.mxu0 0
    %238 = vmatpush1.bf16.msra.mxu0 0
    %239 = vmatprep.subr.bf16.mxu0 0
    %240 = vmatpush1.bf16.msra.mxu0 0
    %241 = vmatprep.subr.bf16.mxu0 0
    %242 = vmatpush1.bf16.msra.mxu0 0
    %243 = vmatprep.subr.bf16.mxu0 0
    %244 = vmatpush1.bf16.msra.mxu0 0
    %245 = vmatprep.subr.bf16.mxu0 0
    %246 = vmatpush1.bf16.msra.mxu0 0
    %247 = vmatprep.subr.bf16.mxu0 0
    %248 = vmatpush1.bf16.msra.mxu0 0
    %249 = vmatprep.subr.bf16.mxu0 0
    %250 = vmatpush1.bf16.msra.mxu0 0
    %251 = vmatprep.subr.bf16.mxu0 0
    %252 = vmatpush1.bf16.msra.mxu0 0
    %253 = vmatprep.subr.bf16.mxu0 0
    %254 = vmatpush1.bf16.msra.mxu0 0
    %255 = vmatprep.mubr.bf16.mxu0 0
    %256 = vmatmul.mubr.bf16.gmra.mrb[0].mxu0 %v221
    %v257 = vpop.f32.mrb[0].mxu0
    %v258 = vadd.f32 0.0, %v257
    %v259 = vpop.f32.mrb[0].mxu0
    %v260 = vpop.f32.mrb[0].mxu0
    %v261 = vadd.f32 0.0, %v260
    %v262 = vpop.f32.mrb[0].mxu0
    %263 = vdwg.mxu0
    %v268 = vunpack.c.l.b16 %v199
    %v269 = vunpack.c.l.b16 %v200
    %v270 = vunpack.c.l.b16 %v201
    %v271 = vunpack.c.l.b16 %v202
    %v272 = vpack.c.b16 %v269, %v268
    %v273 = vpack.c.b16 %v271, %v270
    %276 = vmatprep.subr.bf16.mxu0 0
    %277 = vmatpush1.bf16.msra.mxu0 %v272
    %278 = vmatprep.subr.bf16.mxu0 0
    %279 = vmatpush1.bf16.msra.mxu0 %v273
    %280 = vmatprep.subr.bf16.mxu0 0
    %281 = vmatpush1.bf16.msra.mxu0 0
    %282 = vmatprep.subr.bf16.mxu0 0
    %283 = vmatpush1.bf16.msra.mxu0 0
    %284 = vmatprep.subr.bf16.mxu0 0
    %285 = vmatpush1.bf16.msra.mxu0 0
    %286 = vmatprep.subr.bf16.mxu0 0
    %287 = vmatpush1.bf16.msra.mxu0 0
    %288 = vmatprep.subr.bf16.mxu0 0
    %289 = vmatpush1.bf16.msra.mxu0 0
    %290 = vmatprep.subr.bf16.mxu0 0
    %291 = vmatpush1.bf16.msra.mxu0 0
    %292 = vmatprep.subr.bf16.mxu0 0
    %293 = vmatpush1.bf16.msra.mxu0 0
    %294 = vmatprep.subr.bf16.mxu0 0
    %295 = vmatpush1.bf16.msra.mxu0 0
    %296 = vmatprep.subr.bf16.mxu0 0
    %297 = vmatpush1.bf16.msra.mxu0 0
    %298 = vmatprep.subr.bf16.mxu0 0
    %299 = vmatpush1.bf16.msra.mxu0 0
    %300 = vmatprep.subr.bf16.mxu0 0
    %301 = vmatpush1.bf16.msra.mxu0 0
    %302 = vmatprep.subr.bf16.mxu0 0
    %303 = vmatpush1.bf16.msra.mxu0 0
    %304 = vmatprep.subr.bf16.mxu0 0
    %305 = vmatpush1.bf16.msra.mxu0 0
    %306 = vmatprep.subr.bf16.mxu0 0
    %307 = vmatpush1.bf16.msra.mxu0 0
    %308 = vmatprep.mubr.bf16.mxu0 0
    %309 = vmatmul.mubr.bf16.gmra.mrb[0].mxu0 %v134
    %v310 = vpop.f32.mrb[0].mxu0
    %v311 = vadd.f32 %v258, %v310
    %v312 = vpop.f32.mrb[0].mxu0
    %v313 = vpop.f32.mrb[0].mxu0
    %v314 = vadd.f32 %v261, %v313
    %v315 = vpop.f32.mrb[0].mxu0
    %316 = vdwg.mxu0
    %v317 = vld [vmem:[%s6] sm:$0x1]
    %v319 = vlaneseq
    %v320 = vshrl.u32 %v319, 7
    %v321 = vsub.s32 0, %v320
    %v322 = vrot.slane %v317, %v321
    %v324 = vadd.f32 %v311, %v322
    %v325 = vadd.f32 %v314, %v322
    %v326 = vmax.f32 %v324, 0.0
    %v327 = vmax.f32 %v325, 0.0
    %v328 = vpack.c.bf16 %v327, %v326
    %v329 = vld [vmem:[#allocation10] sm:$0xf]
    %v330 = vld [vmem:[#allocation10 + $0x4] sm:$0xf]
    %v331 = vld [vmem:[#allocation10 + $0x8] sm:$0xf]
    %v332 = vld [vmem:[#allocation10 + $0xc] sm:$0xf]
    %v333 = vld [vmem:[%s8] sm:$0x1]
    %v335 = vlaneseq
    %v336 = vshrl.u32 %v335, 7
    %v337 = vsub.s32 0, %v336
    %v338 = vrot.slane %v333, %v337
    %v344 = vunpack.c.l.b16 %v329
    %v345 = vunpack.c.l.b16 %v330
    %v346 = vunpack.c.l.b16 %v331
    %v347 = vunpack.c.l.b16 %v332
    %v348 = vpack.c.b16 %v345, %v344
    %v349 = vpack.c.b16 %v347, %v346
    %v353 = vsel %vm132, %v328, 0
    %355 = vmatprep.subr.bf16.mxu0 0
    %356 = vmatpush1.bf16.msra.mxu0 %v348
    %357 = vmatprep.subr.bf16.mxu0 0
    %358 = vmatpush1.bf16.msra.mxu0 %v349
    %359 = vmatprep.subr.bf16.mxu0 0
    %360 = vmatpush1.bf16.msra.mxu0 0
    %361 = vmatprep.subr.bf16.mxu0 0
    %362 = vmatpush1.bf16.msra.mxu0 0
    %363 = vmatprep.subr.bf16.mxu0 0
    %364 = vmatpush1.bf16.msra.mxu0 0
    %365 = vmatprep.subr.bf16.mxu0 0
    %366 = vmatpush1.bf16.msra.mxu0 0
    %367 = vmatprep.subr.bf16.mxu0 0
    %368 = vmatpush1.bf16.msra.mxu0 0
    %369 = vmatprep.subr.bf16.mxu0 0
    %370 = vmatpush1.bf16.msra.mxu0 0
    %371 = vmatprep.subr.bf16.mxu0 0
    %372 = vmatpush1.bf16.msra.mxu0 0
    %373 = vmatprep.subr.bf16.mxu0 0
    %374 = vmatpush1.bf16.msra.mxu0 0
    %375 = vmatprep.subr.bf16.mxu0 0
    %376 = vmatpush1.bf16.msra.mxu0 0
    %377 = vmatprep.subr.bf16.mxu0 0
    %378 = vmatpush1.bf16.msra.mxu0 0
    %379 = vmatprep.subr.bf16.mxu0 0
    %380 = vmatpush1.bf16.msra.mxu0 0
    %381 = vmatprep.subr.bf16.mxu0 0
    %382 = vmatpush1.bf16.msra.mxu0 0
    %383 = vmatprep.subr.bf16.mxu0 0
    %384 = vmatpush1.bf16.msra.mxu0 0
    %385 = vmatprep.subr.bf16.mxu0 0
    %386 = vmatpush1.bf16.msra.mxu0 0
    %387 = vmatprep.mubr.bf16.mxu0 0
    %388 = vmatmul.mubr.bf16.gmra.mrb[0].mxu0 %v353
    %v389 = vpop.f32.mrb[0].mxu0
    %v390 = vadd.f32 %v338, %v389
    %v391 = vpop.f32.mrb[0].mxu0
    %v392 = vpop.f32.mrb[0].mxu0
    %v393 = vadd.f32 %v338, %v392
    %v394 = vpop.f32.mrb[0].mxu0
    %395 = vdwg.mxu0
    %v396 = vadd.f32 %v171, %v390
    %v397 = vadd.f32 %v174, %v393
    %v398 = vpack.c.bf16 %v397, %v396
    %v400 = vunpack.c.l.b16 %v398
    %v401 = vunpack.c.h.b16 %v398
    %v402 = vpack.c.b16 %v400, %v400
    %v403 = vpack.c.b16 %v401, %v401
    %406 = vst [vmem:[#allocation11] sm:$0xf] %v402
    %407 = vst [vmem:[#allocation11 + $0x4] sm:$0xf] %v403
    // Predicated region
    $region58: #{tpu_custom_call.1} parent=1 // pred_check
      _
    $region59: #{tpu_custom_call.1} parent=1 // pred_check_branch
      %409 = sbr.rel (0) target = $region61
    $region60: #{tpu_custom_call.1} parent=1 // pred_region
      %s411 = ssub.s32 128, 128
      %412 = vsyncadd [#allocation4], %s411
      %s413 = sshll.u32 [#allocation11], 4
      %s414 = int_to_ptr.vmem [resolvable:$true] %s413
      %419 = dma.vmem_to_hbm [thread:$0]  %s414, 128, %s9, [#allocation4], 64, 64, 4
    $region61: #{tpu_custom_call.1} parent=1 // pred_fallthru
      _
    // Predicated region
    $region62: #{tpu_custom_call.1} parent=1 // pred_check
      _
    $region63: #{tpu_custom_call.1} parent=1 // pred_check_branch
      %421 = sbr.rel (0) target = $region65
    $region64: #{tpu_custom_call.1} parent=1 // pred_region
      %422 = dma.done [#allocation4], 128
    $region65: #{tpu_custom_call.1} parent=1 // pred_fallthru
      _
    %423 = vsyncpa [#allocation3], 1
    %424 = vsyncpa [#allocation6], 1
    %425 = vsyncpa [#allocation9], 1
    %426 = vsyncpa [#allocation4], 1

</llo_original>
